<compile_context>
chip_gen: v5e
topology: v5e:2x2
jax: 0.10.0
libtpu: 0.0.40
codegen_flags: <defaults>
</compile_context>

<pallas_src>
import functools

import jax
import jax.numpy as jnp
from jax.experimental import pallas as pl
from jax.experimental.pallas import tpu as pltpu


def _mlp_kernel(x_ref, *refs, num_layers: int, use_bf16: bool):
    """Fused MLP on one VMEM-resident batch tile.

    refs = (w0, b0, w1, b1, ..., w_{L-1}, b_{L-1}, o_ref)
    """
    o_ref = refs[-1]
    wb_refs = refs[:-1]
    h = x_ref[...].astype(jnp.float32)
    for idx in range(num_layers):
        w = wb_refs[2 * idx][...]                       # (in, out), grid-resident
        b = wb_refs[2 * idx + 1][...].astype(jnp.float32)  # (1, out) -> bcast
        if use_bf16:
            # bf16 MXU inputs, f32 accumulation (safe on v5e/v6e/v7x).
            h = jnp.dot(h.astype(jnp.bfloat16), w.astype(jnp.bfloat16),
                        preferred_element_type=jnp.float32) + b
        else:
            h = jnp.dot(h, w.astype(jnp.float32),
                        preferred_element_type=jnp.float32) + b
        if idx < num_layers - 1:
            if use_bf16:
                # exp + approx reciprocal both land on the EUP slot (VALU-free).
                h = pl.reciprocal(1.0 + jnp.exp(-h), approx=True)
            else:
                h = jax.nn.sigmoid(h)                   # exact f32 path
    o_ref[...] = h.astype(o_ref.dtype)


def network_forward(x: jax.Array, params, *, batch_tile: int = 8192,
                    use_bf16_matmul: bool = False) -> jax.Array:
    """Equivalent of Network.forward: single fused pallas_call, batch-tiled grid."""
    B, F = x.shape
    num_layers = len(params)
    dim_out = params[-1][0].shape[1]

    # --- batch tiling: no wrapper-side padding, no output slicing ---
    if B <= 8:
        TB = B                                  # block == full dim (always legal)
    else:
        TB = max(8, (min(batch_tile, B) // 8) * 8)   # multiple of 8 (sublane rule)
        if pl.cdiv(B, TB) < 2 and B >= 16:
            # Guarantee >= 2 grid steps so both v7x TensorCores get work.
            TB = ((pl.cdiv(B, 2) + 7) // 8) * 8
    grid = (pl.cdiv(B, TB),)

    flat_params = []
    for (w, b) in params:
        flat_params.extend([w, b])

    kernel = functools.partial(_mlp_kernel, num_layers=num_layers,
                               use_bf16=use_bf16_matmul)

    def build(weight_pipeline_mode):
        in_specs = [pl.BlockSpec((TB, F), lambda i: (i, 0))]   # batch-tiled acts
        for (w, b) in params:
            if weight_pipeline_mode is not None:
                wspec = pl.BlockSpec(w.shape, lambda i: (0, 0),
                                     pipeline_mode=weight_pipeline_mode)
                bspec = pl.BlockSpec(b.shape, lambda i: (0, 0),
                                     pipeline_mode=weight_pipeline_mode)
            else:
                wspec = pl.BlockSpec(w.shape, lambda i: (0, 0))
                bspec = pl.BlockSpec(b.shape, lambda i: (0, 0))
            in_specs.extend([wspec, bspec])
        return pl.pallas_call(
            kernel,
            out_shape=jax.ShapeDtypeStruct((B, dim_out), x.dtype),
            grid=grid,
            in_specs=in_specs,
            # Block last dim == full array dim -> legal; no 128-lane padding,
            # HBM writeback is only the real dim_out bytes per row.
            out_specs=pl.BlockSpec((TB, dim_out), lambda i: (i, 0)),
            compiler_params=pltpu.CompilerParams(
                dimension_semantics=("parallel",),
                vmem_limit_bytes=32 * 1024 * 1024,   # safe on v5e/v6e/v7x
            ),
        )

    try:
        # Constant-index weight blocks never change across the grid; single
        # buffering halves their resident VMEM (matters for large `neurons` on v7x).
        return build(pl.Buffered(1))(x, *flat_params)
    except Exception:
        # Fallback if this jax build rejects single-buffered top-level BlockSpecs;
        # double-buffering small weights is harmless.
        return build(None)(x, *flat_params)


def init_network_params(key, feature_size: int, dimension_size: int,
                        neurons: int, hidden_layers: int):
    """Deterministic parameter init mirroring the PyTorch module's layer shapes.

    inputs  = [featureSize] + [neurons] * (hiddenLayers + 1)
    outputs = [neurons] * (hiddenLayers + 1) + [dimensionSize]
    """
    inputs = [feature_size] + [neurons for _ in range(hidden_layers + 1)]
    outputs = [neurons for _ in range(hidden_layers + 1)] + [dimension_size]
    params = []
    for i, o in zip(inputs, outputs):
        key, wk, bk = jax.random.split(key, 3)
        bound = 1.0 / jnp.sqrt(jnp.float32(i))  # PyTorch nn.Linear default range
        w = jax.random.uniform(wk, (i, o), jnp.float32, -bound, bound)
        b = jax.random.uniform(bk, (1, o), jnp.float32, -bound, bound)
        params.append((w, b))
    return params


def network_forward_ref(x: jax.Array, params) -> jax.Array:
    """Pure-JAX reference for correctness checking."""
    n = len(params)
    for idx, (w, b) in enumerate(params):
        x = x @ w + b
        if idx < n - 1:
            x = jax.nn.sigmoid(x)
    return x


if __name__ == "__main__":
    # Small shapes consistent with the module:
    feature_size = 16    # featureSize
    dimension_size = 4   # dimensionSize
    neurons = 32         # neurons
    hidden_layers = 2    # hiddenLayers

    key = jax.random.PRNGKey(0)
    key, xk, xk2 = jax.random.split(key, 3)
    params = init_network_params(key, feature_size, dimension_size,
                                 neurons, hidden_layers)

    # Test 1: small batch (single full-batch block), exact f32 path.
    x = jax.random.normal(xk, (8, feature_size), jnp.float32)
    out = jax.block_until_ready(network_forward(x, params))
    ref = network_forward_ref(x, params)
    assert out.shape == (8, dimension_size)
    assert jnp.allclose(out, ref, atol=1e-5, rtol=1e-5)

    # Test 2: non-divisible batch -> exercises >=2 grid steps ("parallel" on v7x)
    # and the Pallas partial edge block (rows are independent, so the garbage
    # rows of the last partial block cannot contaminate valid rows).
    x2 = jax.random.normal(xk2, (300, feature_size), jnp.float32)
    out2 = jax.block_until_ready(network_forward(x2, params))
    ref2 = network_forward_ref(x2, params)
    assert out2.shape == (300, dimension_size)
    assert jnp.allclose(out2, ref2, atol=1e-5, rtol=1e-5)

    # Test 3: bf16 MXU fast path (f32 accumulation + f32 epilogue), looser tolerance.
    out3 = jax.block_until_ready(network_forward(x2, params, use_bf16_matmul=True))
    assert out3.shape == (300, dimension_size)
    assert jnp.allclose(out3, ref2, atol=5e-2, rtol=5e-2)

    print("KERNEL_OK")
</pallas_src>

<mosaic_0001>
module attributes {stable_mosaic.version = 11 : i64} {
  func.func @_mlp_kernel(%arg0: i32, %arg1: memref<8x16xf32, #tpu.memory_space<vmem>>, %arg2: memref<16x32xf32, #tpu.memory_space<vmem>>, %arg3: memref<1x32xf32, #tpu.memory_space<vmem>>, %arg4: memref<32x32xf32, #tpu.memory_space<vmem>>, %arg5: memref<1x32xf32, #tpu.memory_space<vmem>>, %arg6: memref<32x32xf32, #tpu.memory_space<vmem>>, %arg7: memref<1x32xf32, #tpu.memory_space<vmem>>, %arg8: memref<32x4xf32, #tpu.memory_space<vmem>>, %arg9: memref<1x4xf32, #tpu.memory_space<vmem>>, %arg10: memref<8x4xf32, #tpu.memory_space<vmem>>) attributes {dimension_semantics = [#tpu.dimension_semantics<parallel>], iteration_bounds = array<i64: 1>, scalar_prefetch = 0 : i64, scratch_operands = 0 : i64, tpu.core_type = #tpu.core_type<tc>, window_params = [{transform_indices = @transform_0, window_bounds = array<i64: 8, 16>}, {pipeline_mode = #tpu.pipeline_mode<synchronous>, transform_indices = @transform_1, window_bounds = array<i64: 16, 32>}, {pipeline_mode = #tpu.pipeline_mode<synchronous>, transform_indices = @transform_2, window_bounds = array<i64: 1, 32>}, {pipeline_mode = #tpu.pipeline_mode<synchronous>, transform_indices = @transform_3, window_bounds = array<i64: 32, 32>}, {pipeline_mode = #tpu.pipeline_mode<synchronous>, transform_indices = @transform_4, window_bounds = array<i64: 1, 32>}, {pipeline_mode = #tpu.pipeline_mode<synchronous>, transform_indices = @transform_5, window_bounds = array<i64: 32, 32>}, {pipeline_mode = #tpu.pipeline_mode<synchronous>, transform_indices = @transform_6, window_bounds = array<i64: 1, 32>}, {pipeline_mode = #tpu.pipeline_mode<synchronous>, transform_indices = @transform_7, window_bounds = array<i64: 32, 4>}, {pipeline_mode = #tpu.pipeline_mode<synchronous>, transform_indices = @transform_8, window_bounds = array<i64: 1, 4>}, {transform_indices = @transform_9, window_bounds = array<i64: 8, 4>}]} {
    %c0 = arith.constant 0 : index
    %c0_0 = arith.constant 0 : index
    %0 = vector.load %arg1[%c0, %c0_0] : memref<8x16xf32, #tpu.memory_space<vmem>>, vector<8x16xf32>
    %c0_1 = arith.constant 0 : index
    %c0_2 = arith.constant 0 : index
    %1 = vector.load %arg2[%c0_1, %c0_2] : memref<16x32xf32, #tpu.memory_space<vmem>>, vector<16x32xf32>
    %c0_3 = arith.constant 0 : index
    %c0_4 = arith.constant 0 : index
    %2 = vector.load %arg3[%c0_3, %c0_4] : memref<1x32xf32, #tpu.memory_space<vmem>>, vector<1x32xf32>
    %cst = arith.constant dense<0.000000e+00> : vector<8x32xf32>
    %3 = tpu.matmul %0, %1, %cst {dimension_numbers = #tpu.dot_dimension_numbers<[1], [0], [0], [1], [0, 0, 1, 1], [], []>} : vector<8x16xf32>, vector<16x32xf32>, vector<8x32xf32> -> vector<8x32xf32>
    %4 = vector.broadcast %2 : vector<1x32xf32> to vector<8x32xf32>
    %5 = arith.addf %3, %4 : vector<8x32xf32>
    %6 = arith.negf %5 : vector<8x32xf32>
    %7 = math.exp %6 : vector<8x32xf32>
    %cst_5 = arith.constant 1.000000e+00 : f32
    %8 = vector.broadcast %cst_5 : f32 to vector<8x32xf32>
    %9 = arith.addf %8, %7 : vector<8x32xf32>
    %10 = arith.divf %8, %9 : vector<8x32xf32>
    %c0_6 = arith.constant 0 : index
    %c0_7 = arith.constant 0 : index
    %11 = vector.load %arg4[%c0_6, %c0_7] : memref<32x32xf32, #tpu.memory_space<vmem>>, vector<32x32xf32>
    %c0_8 = arith.constant 0 : index
    %c0_9 = arith.constant 0 : index
    %12 = vector.load %arg5[%c0_8, %c0_9] : memref<1x32xf32, #tpu.memory_space<vmem>>, vector<1x32xf32>
    %cst_10 = arith.constant dense<0.000000e+00> : vector<8x32xf32>
    %13 = tpu.matmul %10, %11, %cst_10 {dimension_numbers = #tpu.dot_dimension_numbers<[1], [0], [0], [1], [0, 0, 1, 1], [], []>} : vector<8x32xf32>, vector<32x32xf32>, vector<8x32xf32> -> vector<8x32xf32>
    %14 = vector.broadcast %12 : vector<1x32xf32> to vector<8x32xf32>
    %15 = arith.addf %13, %14 : vector<8x32xf32>
    %16 = arith.negf %15 : vector<8x32xf32>
    %17 = math.exp %16 : vector<8x32xf32>
    %cst_11 = arith.constant 1.000000e+00 : f32
    %18 = vector.broadcast %cst_11 : f32 to vector<8x32xf32>
    %19 = arith.addf %18, %17 : vector<8x32xf32>
    %20 = arith.divf %18, %19 : vector<8x32xf32>
    %c0_12 = arith.constant 0 : index
    %c0_13 = arith.constant 0 : index
    %21 = vector.load %arg6[%c0_12, %c0_13] : memref<32x32xf32, #tpu.memory_space<vmem>>, vector<32x32xf32>
    %c0_14 = arith.constant 0 : index
    %c0_15 = arith.constant 0 : index
    %22 = vector.load %arg7[%c0_14, %c0_15] : memref<1x32xf32, #tpu.memory_space<vmem>>, vector<1x32xf32>
    %cst_16 = arith.constant dense<0.000000e+00> : vector<8x32xf32>
    %23 = tpu.matmul %20, %21, %cst_16 {dimension_numbers = #tpu.dot_dimension_numbers<[1], [0], [0], [1], [0, 0, 1, 1], [], []>} : vector<8x32xf32>, vector<32x32xf32>, vector<8x32xf32> -> vector<8x32xf32>
    %24 = vector.broadcast %22 : vector<1x32xf32> to vector<8x32xf32>
    %25 = arith.addf %23, %24 : vector<8x32xf32>
    %26 = arith.negf %25 : vector<8x32xf32>
    %27 = math.exp %26 : vector<8x32xf32>
    %cst_17 = arith.constant 1.000000e+00 : f32
    %28 = vector.broadcast %cst_17 : f32 to vector<8x32xf32>
    %29 = arith.addf %28, %27 : vector<8x32xf32>
    %30 = arith.divf %28, %29 : vector<8x32xf32>
    %c0_18 = arith.constant 0 : index
    %c0_19 = arith.constant 0 : index
    %31 = vector.load %arg8[%c0_18, %c0_19] : memref<32x4xf32, #tpu.memory_space<vmem>>, vector<32x4xf32>
    %c0_20 = arith.constant 0 : index
    %c0_21 = arith.constant 0 : index
    %32 = vector.load %arg9[%c0_20, %c0_21] : memref<1x4xf32, #tpu.memory_space<vmem>>, vector<1x4xf32>
    %cst_22 = arith.constant dense<0.000000e+00> : vector<8x4xf32>
    %33 = tpu.matmul %30, %31, %cst_22 {dimension_numbers = #tpu.dot_dimension_numbers<[1], [0], [0], [1], [0, 0, 1, 1], [], []>} : vector<8x32xf32>, vector<32x4xf32>, vector<8x4xf32> -> vector<8x4xf32>
    %34 = vector.broadcast %32 : vector<1x4xf32> to vector<8x4xf32>
    %35 = arith.addf %33, %34 : vector<8x4xf32>
    %c0_23 = arith.constant 0 : index
    %c0_24 = arith.constant 0 : index
    %36 = vector.load %arg10[%c0_23, %c0_24] : memref<8x4xf32, #tpu.memory_space<vmem>>, vector<8x4xf32>
    tpu.vector_store %arg10[%c0_23, %c0_24], %35 {strides = array<i32>} : memref<8x4xf32, #tpu.memory_space<vmem>>, vector<8x4xf32>,
    return
  }
  func.func @transform_0(%arg0: i32) -> (i32, i32) {
    %c0_i32 = arith.constant 0 : i32
    %c0_i32_0 = arith.constant 0 : i32
    return %arg0, %c0_i32 : i32, i32
  }
  func.func @transform_1(%arg0: i32) -> (i32, i32) {
    %c0_i32 = arith.constant 0 : i32
    %c0_i32_0 = arith.constant 0 : i32
    %c0_i32_1 = arith.constant 0 : i32
    return %c0_i32, %c0_i32_0 : i32, i32
  }
  func.func @transform_2(%arg0: i32) -> (i32, i32) {
    %c0_i32 = arith.constant 0 : i32
    %c0_i32_0 = arith.constant 0 : i32
    %c0_i32_1 = arith.constant 0 : i32
    return %c0_i32, %c0_i32_0 : i32, i32
  }
  func.func @transform_3(%arg0: i32) -> (i32, i32) {
    %c0_i32 = arith.constant 0 : i32
    %c0_i32_0 = arith.constant 0 : i32
    %c0_i32_1 = arith.constant 0 : i32
    return %c0_i32, %c0_i32_0 : i32, i32
  }
  func.func @transform_4(%arg0: i32) -> (i32, i32) {
    %c0_i32 = arith.constant 0 : i32
    %c0_i32_0 = arith.constant 0 : i32
    %c0_i32_1 = arith.constant 0 : i32
    return %c0_i32, %c0_i32_0 : i32, i32
  }
  func.func @transform_5(%arg0: i32) -> (i32, i32) {
    %c0_i32 = arith.constant 0 : i32
    %c0_i32_0 = arith.constant 0 : i32
    %c0_i32_1 = arith.constant 0 : i32
    return %c0_i32, %c0_i32_0 : i32, i32
  }
  func.func @transform_6(%arg0: i32) -> (i32, i32) {
    %c0_i32 = arith.constant 0 : i32
    %c0_i32_0 = arith.constant 0 : i32
    %c0_i32_1 = arith.constant 0 : i32
    return %c0_i32, %c0_i32_0 : i32, i32
  }
  func.func @transform_7(%arg0: i32) -> (i32, i32) {
    %c0_i32 = arith.constant 0 : i32
    %c0_i32_0 = arith.constant 0 : i32
    %c0_i32_1 = arith.constant 0 : i32
    return %c0_i32, %c0_i32_0 : i32, i32
  }
  func.func @transform_8(%arg0: i32) -> (i32, i32) {
    %c0_i32 = arith.constant 0 : i32
    %c0_i32_0 = arith.constant 0 : i32
    %c0_i32_1 = arith.constant 0 : i32
    return %c0_i32, %c0_i32_0 : i32, i32
  }
  func.func @transform_9(%arg0: i32) -> (i32, i32) {
    %c0_i32 = arith.constant 0 : i32
    %c0_i32_0 = arith.constant 0 : i32
    return %arg0, %c0_i32 : i32, i32
  }
}

module attributes {stable_mosaic.version = 11 : i64} {
  func.func @_mlp_kernel(%arg0: i32, %arg1: memref<8x16xf32, #tpu.memory_space<vmem>>, %arg2: memref<16x32xf32, #tpu.memory_space<vmem>>, %arg3: memref<1x32xf32, #tpu.memory_space<vmem>>, %arg4: memref<32x32xf32, #tpu.memory_space<vmem>>, %arg5: memref<1x32xf32, #tpu.memory_space<vmem>>, %arg6: memref<32x32xf32, #tpu.memory_space<vmem>>, %arg7: memref<1x32xf32, #tpu.memory_space<vmem>>, %arg8: memref<32x4xf32, #tpu.memory_space<vmem>>, %arg9: memref<1x4xf32, #tpu.memory_space<vmem>>, %arg10: memref<8x4xf32, #tpu.memory_space<vmem>>) attributes {dimension_semantics = [#tpu.dimension_semantics<parallel>], iteration_bounds = array<i64: 1>, scalar_prefetch = 0 : i64, scratch_operands = 0 : i64, tpu.core_type = #tpu.core_type<tc>, window_params = [{transform_indices = @transform_0, window_bounds = array<i64: 8, 16>}, {pipeline_mode = #tpu.pipeline_mode<synchronous>, transform_indices = @transform_1, window_bounds = array<i64: 16, 32>}, {pipeline_mode = #tpu.pipeline_mode<synchronous>, transform_indices = @transform_2, window_bounds = array<i64: 1, 32>}, {pipeline_mode = #tpu.pipeline_mode<synchronous>, transform_indices = @transform_3, window_bounds = array<i64: 32, 32>}, {pipeline_mode = #tpu.pipeline_mode<synchronous>, transform_indices = @transform_4, window_bounds = array<i64: 1, 32>}, {pipeline_mode = #tpu.pipeline_mode<synchronous>, transform_indices = @transform_5, window_bounds = array<i64: 32, 32>}, {pipeline_mode = #tpu.pipeline_mode<synchronous>, transform_indices = @transform_6, window_bounds = array<i64: 1, 32>}, {pipeline_mode = #tpu.pipeline_mode<synchronous>, transform_indices = @transform_7, window_bounds = array<i64: 32, 4>}, {pipeline_mode = #tpu.pipeline_mode<synchronous>, transform_indices = @transform_8, window_bounds = array<i64: 1, 4>}, {transform_indices = @transform_9, window_bounds = array<i64: 8, 4>}]} {
    %c0 = arith.constant 0 : index
    %c0_0 = arith.constant 0 : index
    %0 = vector.load %arg1[%c0, %c0_0] : memref<8x16xf32, #tpu.memory_space<vmem>>, vector<8x16xf32>
    %c0_1 = arith.constant 0 : index
    %c0_2 = arith.constant 0 : index
    %1 = vector.load %arg2[%c0_1, %c0_2] : memref<16x32xf32, #tpu.memory_space<vmem>>, vector<16x32xf32>
    %c0_3 = arith.constant 0 : index
    %c0_4 = arith.constant 0 : index
    %2 = vector.load %arg3[%c0_3, %c0_4] : memref<1x32xf32, #tpu.memory_space<vmem>>, vector<1x32xf32>
    %cst = arith.constant dense<0.000000e+00> : vector<8x32xf32>
    %3 = tpu.matmul %0, %1, %cst {dimension_numbers = #tpu.dot_dimension_numbers<[1], [0], [0], [1], [0, 0, 1, 1], [], []>} : vector<8x16xf32>, vector<16x32xf32>, vector<8x32xf32> -> vector<8x32xf32>
    %4 = vector.broadcast %2 : vector<1x32xf32> to vector<8x32xf32>
    %5 = arith.addf %3, %4 : vector<8x32xf32>
    %6 = arith.negf %5 : vector<8x32xf32>
    %7 = math.exp %6 : vector<8x32xf32>
    %cst_5 = arith.constant 1.000000e+00 : f32
    %8 = vector.broadcast %cst_5 : f32 to vector<8x32xf32>
    %9 = arith.addf %8, %7 : vector<8x32xf32>
    %10 = arith.divf %8, %9 : vector<8x32xf32>
    %c0_6 = arith.constant 0 : index
    %c0_7 = arith.constant 0 : index
    %11 = vector.load %arg4[%c0_6, %c0_7] : memref<32x32xf32, #tpu.memory_space<vmem>>, vector<32x32xf32>
    %c0_8 = arith.constant 0 : index
    %c0_9 = arith.constant 0 : index
    %12 = vector.load %arg5[%c0_8, %c0_9] : memref<1x32xf32, #tpu.memory_space<vmem>>, vector<1x32xf32>
    %cst_10 = arith.constant dense<0.000000e+00> : vector<8x32xf32>
    %13 = tpu.matmul %10, %11, %cst_10 {dimension_numbers = #tpu.dot_dimension_numbers<[1], [0], [0], [1], [0, 0, 1, 1], [], []>} : vector<8x32xf32>, vector<32x32xf32>, vector<8x32xf32> -> vector<8x32xf32>
    %14 = vector.broadcast %12 : vector<1x32xf32> to vector<8x32xf32>
    %15 = arith.addf %13, %14 : vector<8x32xf32>
    %16 = arith.negf %15 : vector<8x32xf32>
    %17 = math.exp %16 : vector<8x32xf32>
    %cst_11 = arith.constant 1.000000e+00 : f32
    %18 = vector.broadcast %cst_11 : f32 to vector<8x32xf32>
    %19 = arith.addf %18, %17 : vector<8x32xf32>
    %20 = arith.divf %18, %19 : vector<8x32xf32>
    %c0_12 = arith.constant 0 : index
    %c0_13 = arith.constant 0 : index
    %21 = vector.load %arg6[%c0_12, %c0_13] : memref<32x32xf32, #tpu.memory_space<vmem>>, vector<32x32xf32>
    %c0_14 = arith.constant 0 : index
    %c0_15 = arith.constant 0 : index
    %22 = vector.load %arg7[%c0_14, %c0_15] : memref<1x32xf32, #tpu.memory_space<vmem>>, vector<1x32xf32>
    %cst_16 = arith.constant dense<0.000000e+00> : vector<8x32xf32>
    %23 = tpu.matmul %20, %21, %cst_16 {dimension_numbers = #tpu.dot_dimension_numbers<[1], [0], [0], [1], [0, 0, 1, 1], [], []>} : vector<8x32xf32>, vector<32x32xf32>, vector<8x32xf32> -> vector<8x32xf32>
    %24 = vector.broadcast %22 : vector<1x32xf32> to vector<8x32xf32>
    %25 = arith.addf %23, %24 : vector<8x32xf32>
    %26 = arith.negf %25 : vector<8x32xf32>
    %27 = math.exp %26 : vector<8x32xf32>
    %cst_17 = arith.constant 1.000000e+00 : f32
    %28 = vector.broadcast %cst_17 : f32 to vector<8x32xf32>
    %29 = arith.addf %28, %27 : vector<8x32xf32>
    %30 = arith.divf %28, %29 : vector<8x32xf32>
    %c0_18 = arith.constant 0 : index
    %c0_19 = arith.constant 0 : index
    %31 = vector.load %arg8[%c0_18, %c0_19] : memref<32x4xf32, #tpu.memory_space<vmem>>, vector<32x4xf32>
    %c0_20 = arith.constant 0 : index
    %c0_21 = arith.constant 0 : index
    %32 = vector.load %arg9[%c0_20, %c0_21] : memref<1x4xf32, #tpu.memory_space<vmem>>, vector<1x4xf32>
    %cst_22 = arith.constant dense<0.000000e+00> : vector<8x4xf32>
    %33 = tpu.matmul %30, %31, %cst_22 {dimension_numbers = #tpu.dot_dimension_numbers<[1], [0], [0], [1], [0, 0, 1, 1], [], []>} : vector<8x32xf32>, vector<32x4xf32>, vector<8x4xf32> -> vector<8x4xf32>
    %34 = vector.broadcast %32 : vector<1x4xf32> to vector<8x4xf32>
    %35 = arith.addf %33, %34 : vector<8x4xf32>
    %c0_23 = arith.constant 0 : index
    %c0_24 = arith.constant 0 : index
    %36 = vector.load %arg10[%c0_23, %c0_24] : memref<8x4xf32, #tpu.memory_space<vmem>>, vector<8x4xf32>
    tpu.vector_store %arg10[%c0_23, %c0_24], %35 {strides = array<i32>} : memref<8x4xf32, #tpu.memory_space<vmem>>, vector<8x4xf32>,
    return
  }
  func.func @transform_0(%arg0: i32) -> (i32, i32) {
    %c0_i32 = arith.constant 0 : i32
    %c0_i32_0 = arith.constant 0 : i32
    return %arg0, %c0_i32 : i32, i32
  }
  func.func @transform_1(%arg0: i32) -> (i32, i32) {
    %c0_i32 = arith.constant 0 : i32
    %c0_i32_0 = arith.constant 0 : i32
    %c0_i32_1 = arith.constant 0 : i32
    return %c0_i32, %c0_i32_0 : i32, i32
  }
  func.func @transform_2(%arg0: i32) -> (i32, i32) {
    %c0_i32 = arith.constant 0 : i32
    %c0_i32_0 = arith.constant 0 : i32
    %c0_i32_1 = arith.constant 0 : i32
    return %c0_i32, %c0_i32_0 : i32, i32
  }
  func.func @transform_3(%arg0: i32) -> (i32, i32) {
    %c0_i32 = arith.constant 0 : i32
    %c0_i32_0 = arith.constant 0 : i32
    %c0_i32_1 = arith.constant 0 : i32
    return %c0_i32, %c0_i32_0 : i32, i32
  }
  func.func @transform_4(%arg0: i32) -> (i32, i32) {
    %c0_i32 = arith.constant 0 : i32
    %c0_i32_0 = arith.constant 0 : i32
    %c0_i32_1 = arith.constant 0 : i32
    return %c0_i32, %c0_i32_0 : i32, i32
  }
  func.func @transform_5(%arg0: i32) -> (i32, i32) {
    %c0_i32 = arith.constant 0 : i32
    %c0_i32_0 = arith.constant 0 : i32
    %c0_i32_1 = arith.constant 0 : i32
    return %c0_i32, %c0_i32_0 : i32, i32
  }
  func.func @transform_6(%arg0: i32) -> (i32, i32) {
    %c0_i32 = arith.constant 0 : i32
    %c0_i32_0 = arith.constant 0 : i32
    %c0_i32_1 = arith.constant 0 : i32
    return %c0_i32, %c0_i32_0 : i32, i32
  }
  func.func @transform_7(%arg0: i32) -> (i32, i32) {
    %c0_i32 = arith.constant 0 : i32
    %c0_i32_0 = arith.constant 0 : i32
    %c0_i32_1 = arith.constant 0 : i32
    return %c0_i32, %c0_i32_0 : i32, i32
  }
  func.func @transform_8(%arg0: i32) -> (i32, i32) {
    %c0_i32 = arith.constant 0 : i32
    %c0_i32_0 = arith.constant 0 : i32
    %c0_i32_1 = arith.constant 0 : i32
    return %c0_i32, %c0_i32_0 : i32, i32
  }
  func.func @transform_9(%arg0: i32) -> (i32, i32) {
    %c0_i32 = arith.constant 0 : i32
    %c0_i32_0 = arith.constant 0 : i32
    return %arg0, %c0_i32 : i32, i32
  }
}

</mosaic_0001>

<llo_original>
// kernel: tpu_custom_call.1
$region0: #{tpu_custom_call.1}
  #allocation0 [shape = 'u32[]', space=smem, size = 0x4, offset = 0x4, fixed_abs, tag = 'smem constant byte address 0x4 - core index']
  #allocation1 [shape = 'u32[72,128]{1,0:T(1,128)}', space=vmem, size = 0x9000, scoped, tag = 'internal scratch']
  %s0 = inlined_call_operand.hbm [shape: f32[8,16], index: 0, kind: input, shape index: {}]
  %s1 = inlined_call_operand.hbm [shape: f32[16,32], index: 1, kind: input, shape index: {}]
  %s2 = inlined_call_operand.vmem [shape: f32[1,32], index: 2, kind: input, shape index: {}]
  %s3 = inlined_call_operand.vmem [shape: f32[32,32], index: 3, kind: input, shape index: {}]
  %s4 = inlined_call_operand.vmem [shape: f32[1,32], index: 4, kind: input, shape index: {}]
  %s5 = inlined_call_operand.hbm [shape: f32[32,32], index: 5, kind: input, shape index: {}]
  %s6 = inlined_call_operand.vmem [shape: f32[1,32], index: 6, kind: input, shape index: {}]
  %s7 = inlined_call_operand.vmem [shape: f32[32,4], index: 7, kind: input, shape index: {}]
  %s8 = inlined_call_operand.vmem [shape: f32[1,4], index: 8, kind: input, shape index: {}]
  %s9 = inlined_call_operand.vmem [shape: f32[8,4], index: 9, kind: output, shape index: {}]
  %s10 = sld [smem:[#allocation0]]
  $region58: #{tpu_custom_call.1} parent=0
    _
  %s12 = ssub.s32 1, %s10
  %s13 = scalar_select 0, %s12, %s10
  $region1: #{tpu_custom_call.1} parent=0
    #allocation2 [shape = 'u8[4096]{0}', space=vmem, size = 0x1000, scoped, tag = 'input window, operand 0, single buffered']
    #allocation3 [shape = 's32[1]{0}', space=sflag, size = 0x4, scoped, tag = 'scoped memory for tpu_custom_call.1']
    #allocation4 [shape = 'u8[8192]{0}', space=vmem, size = 0x2000, scoped, tag = 'input window, operand 1, single buffered']
    #allocation5 [shape = 's32[1]{0}', space=sflag, size = 0x4, scoped, tag = 'scoped memory for tpu_custom_call.1']
    #allocation6 [shape = 'u8[16384]{0}', space=vmem, size = 0x4000, scoped, tag = 'input window, operand 5, single buffered']
    %14 = vsyncpa [#allocation3], 0
    %15 = vsyncpa [#allocation5], 0
    // Predicated region
    $region2: #{tpu_custom_call.1} parent=1 // pred_check
      _
    $region3: #{tpu_custom_call.1} parent=1 // pred_check_branch
      %17 = sbr.rel (0) target = $region5
    $region4: #{tpu_custom_call.1} parent=1 // pred_region
      %19 = vsyncadd [#allocation3], 0
      %s21 = sshll.u32 %s0, 4
      %s22 = int_to_ptr.hbm [resolvable:$true] %s21
      %s23 = sshll.u32 [#allocation2], 4
      %s24 = int_to_ptr.vmem [resolvable:$true] %s23
      %26 = dma.hbm_to_vmem [thread:$0]  %s22, 128, %s24, [#allocation3]
    $region5: #{tpu_custom_call.1} parent=1 // pred_fallthru
      _
    // Predicated region
    $region6: #{tpu_custom_call.1} parent=1 // pred_check
      _
    $region7: #{tpu_custom_call.1} parent=1 // pred_check_branch
      %28 = sbr.rel (0) target = $region9
    $region8: #{tpu_custom_call.1} parent=1 // pred_region
      %30 = vsyncadd [#allocation5], 0
      %s31 = sshll.u32 %s1, 4
      %s32 = int_to_ptr.hbm [resolvable:$true] %s31
      %s33 = sshll.u32 [#allocation4], 4
      %s34 = int_to_ptr.vmem [resolvable:$true] %s33
      %39 = dma.hbm_to_vmem [thread:$0]  %s32, 256, %s34, [#allocation5], 128, 128, 8
    $region9: #{tpu_custom_call.1} parent=1 // pred_fallthru
      _
    // Predicated region
    $region10: #{tpu_custom_call.1} parent=1 // pred_check
      _
    $region11: #{tpu_custom_call.1} parent=1 // pred_check_branch
      %41 = sbr.rel (0) target = $region13
    $region12: #{tpu_custom_call.1} parent=1 // pred_region
      _
    $region13: #{tpu_custom_call.1} parent=1 // pred_fallthru
      _
    // Predicated region
    $region14: #{tpu_custom_call.1} parent=1 // pred_check
      _
    $region15: #{tpu_custom_call.1} parent=1 // pred_check_branch
      %43 = sbr.rel (0) target = $region17
    $region16: #{tpu_custom_call.1} parent=1 // pred_region
      _
    $region17: #{tpu_custom_call.1} parent=1 // pred_fallthru
      _
    // Predicated region
    $region18: #{tpu_custom_call.1} parent=1 // pred_check
      _
    $region19: #{tpu_custom_call.1} parent=1 // pred_check_branch
      %45 = sbr.rel (0) target = $region21
    $region20: #{tpu_custom_call.1} parent=1 // pred_region
      _
    $region21: #{tpu_custom_call.1} parent=1 // pred_fallthru
      _
    // Predicated region
    $region22: #{tpu_custom_call.1} parent=1 // pred_check
      _
    $region23: #{tpu_custom_call.1} parent=1 // pred_check_branch
      %47 = sbr.rel (0) target = $region25
    $region24: #{tpu_custom_call.1} parent=1 // pred_region
      %49 = vsyncadd [#allocation5], 0
      %s50 = sshll.u32 %s5, 4
      %s51 = int_to_ptr.hbm [resolvable:$true] %s50
      %s52 = sshll.u32 [#allocation6], 4
      %s53 = int_to_ptr.vmem [resolvable:$true] %s52
      %58 = dma.hbm_to_vmem [thread:$0]  %s51, 512, %s53, [#allocation5], 128, 128, 8
    $region25: #{tpu_custom_call.1} parent=1 // pred_fallthru
      _
    // Predicated region
    $region26: #{tpu_custom_call.1} parent=1 // pred_check
      _
    $region27: #{tpu_custom_call.1} parent=1 // pred_check_branch
      %60 = sbr.rel (0) target = $region29
    $region28: #{tpu_custom_call.1} parent=1 // pred_region
      _
    $region29: #{tpu_custom_call.1} parent=1 // pred_fallthru
      _
    // Predicated region
    $region30: #{tpu_custom_call.1} parent=1 // pred_check
      _
    $region31: #{tpu_custom_call.1} parent=1 // pred_check_branch
      %62 = sbr.rel (0) target = $region33
    $region32: #{tpu_custom_call.1} parent=1 // pred_region
      _
    $region33: #{tpu_custom_call.1} parent=1 // pred_fallthru
      _
    // Predicated region
    $region34: #{tpu_custom_call.1} parent=1 // pred_check
      _
    $region35: #{tpu_custom_call.1} parent=1 // pred_check_branch
      %64 = sbr.rel (0) target = $region37
    $region36: #{tpu_custom_call.1} parent=1 // pred_region
      _
    $region37: #{tpu_custom_call.1} parent=1 // pred_fallthru
      _
    // Predicated region
    $region38: #{tpu_custom_call.1} parent=1 // pred_check
      _
    $region39: #{tpu_custom_call.1} parent=1 // pred_check_branch
      %66 = sbr.rel (0) target = $region41
    $region40: #{tpu_custom_call.1} parent=1 // pred_region
      %68 = dma.done [#allocation3], 128
    $region41: #{tpu_custom_call.1} parent=1 // pred_fallthru
      _
    // Predicated region
    $region42: #{tpu_custom_call.1} parent=1 // pred_check
      _
    $region43: #{tpu_custom_call.1} parent=1 // pred_check_branch
      %70 = sbr.rel (0) target = $region45
    $region44: #{tpu_custom_call.1} parent=1 // pred_region
      %72 = dma.done [#allocation5], 256
    $region45: #{tpu_custom_call.1} parent=1 // pred_fallthru
      _
    // Predicated region
    $region46: #{tpu_custom_call.1} parent=1 // pred_check
      _
    $region47: #{tpu_custom_call.1} parent=1 // pred_check_branch
      %74 = sbr.rel (0) target = $region49
    $region48: #{tpu_custom_call.1} parent=1 // pred_region
      %76 = dma.done [#allocation5], 512
    $region49: #{tpu_custom_call.1} parent=1 // pred_fallthru
      _
    %v77 = vld [vmem:[#allocation2] sm:$0xff]
    %v78 = vld [vmem:[#allocation4] sm:$0xff]
    %v79 = vld [vmem:[#allocation4 + $0x8] sm:$0xff]
    %v80 = vld [vmem:[%s2] sm:$0x1]
    %v82 = vperm.slane %v80, 0
    %vm84 = vcmask 130048
    %v86 = vsel %vm84, %v77, 0
    %88 = vmatpush.msra.mxu0 0.0
    %89 = vmatpush.msra.mxu0 0.0
    %90 = vmatpush.msra.mxu0 0.0
    %91 = vmatpush.msra.mxu0 0.0
    %92 = vmatpush.msra.mxu0 0.0
    %93 = vmatpush.msra.mxu0 0.0
    %94 = vmatpush.msra.mxu0 0.0
    %95 = vmatpush.msra.mxu0 0.0
    %96 = vmatpush.msra.mxu0 0.0
    %97 = vmatpush.msra.mxu0 0.0
    %98 = vmatpush.msra.mxu0 0.0
    %99 = vmatpush.msra.mxu0 0.0
    %100 = vmatpush.msra.mxu0 0.0
    %101 = vmatpush.msra.mxu0 0.0
    %102 = vmatpush.msra.mxu0 %v79
    %103 = vmatpush.msra.mxu0 %v78
    %104 = vmatmul.f32.gmra.mxu0 %v86
    %v105 = vpop.f32.mrf.mxu0
    %v106 = vadd.f32 %v82, %v105
    %107 = vdwg.mxu0
    %v108 = vxor.u32 %v106, 2147483648
    %v109 = vmul.f32 %v108, 1.442695
    %v110 = vpow.pop %v109
    %v111 = vadd.f32 %v110, 1.0
    %v112 = vrcp.pop %v111
    %v113 = vmul.f32 %v111, %v112
    %v114 = vsub.f32 1.0, %v113
    %v115 = vmul.f32 %v112, %v114
    %v116 = vadd.f32 %v112, %v115
    %vm117 = vweird.f32 %v111
    %vm118 = vweird.f32 %v112
    %vm119 = vmor %vm117, %vm118
    %v120 = vsel %vm119, %v112, %v116
    %v121 = vand.u32 2147483647, %v111
    %vm122 = vcmp.eq.f32.partialorder %v121, 8.507059e+37
    %v123 = vand.u32 %v111, 2147483648
    %v124 = vor.u32 1.1754944e-38, %v123
    %v125 = vsel %vm122, %v124, %v120
    %v126 = vmul.f32 1.0, %v125
    %v127 = vld [vmem:[%s3] sm:$0xff]
    %v128 = vld [vmem:[%s3 + $0x8] sm:$0xff]
    %v129 = vld [vmem:[%s3 + $0x10] sm:$0xff]
    %v130 = vld [vmem:[%s3 + $0x18] sm:$0xff]
    %v131 = vld [vmem:[%s4] sm:$0x1]
    %v133 = vperm.slane %v131, 0
    %vm135 = vcmask 261120
    %v137 = vsel %vm135, %v126, 0
    %139 = vmatpush.msra.mxu0 0.0
    %140 = vmatpush.msra.mxu0 0.0
    %141 = vmatpush.msra.mxu0 0.0
    %142 = vmatpush.msra.mxu0 0.0
    %143 = vmatpush.msra.mxu0 0.0
    %144 = vmatpush.msra.mxu0 0.0
    %145 = vmatpush.msra.mxu0 0.0
    %146 = vmatpush.msra.mxu0 0.0
    %147 = vmatpush.msra.mxu0 0.0
    %148 = vmatpush.msra.mxu0 0.0
    %149 = vmatpush.msra.mxu0 0.0
    %150 = vmatpush.msra.mxu0 0.0
    %151 = vmatpush.msra.mxu0 %v130
    %152 = vmatpush.msra.mxu0 %v129
    %153 = vmatpush.msra.mxu0 %v128
    %154 = vmatpush.msra.mxu0 %v127
    %155 = vmatmul.f32.gmra.mxu0 %v137
    %v156 = vpop.f32.mrf.mxu0
    %v157 = vadd.f32 %v133, %v156
    %158 = vdwg.mxu0
    %v159 = vxor.u32 %v157, 2147483648
    %v160 = vmul.f32 %v159, 1.442695
    %v161 = vpow.pop %v160
    %v162 = vadd.f32 %v161, 1.0
    %v163 = vrcp.pop %v162
    %v164 = vmul.f32 %v162, %v163
    %v165 = vsub.f32 1.0, %v164
    %v166 = vmul.f32 %v163, %v165
    %v167 = vadd.f32 %v163, %v166
    %vm168 = vweird.f32 %v162
    %vm169 = vweird.f32 %v163
    %vm170 = vmor %vm168, %vm169
    %v171 = vsel %vm170, %v163, %v167
    %v172 = vand.u32 2147483647, %v162
    %vm173 = vcmp.eq.f32.partialorder %v172, 8.507059e+37
    %v174 = vand.u32 %v162, 2147483648
    %v175 = vor.u32 1.1754944e-38, %v174
    %v176 = vsel %vm173, %v175, %v171
    %v177 = vmul.f32 1.0, %v176
    %v178 = vld [vmem:[#allocation6] sm:$0xff]
    %v179 = vld [vmem:[#allocation6 + $0x8] sm:$0xff]
    %v180 = vld [vmem:[#allocation6 + $0x10] sm:$0xff]
    %v181 = vld [vmem:[#allocation6 + $0x18] sm:$0xff]
    %v182 = vld [vmem:[%s6] sm:$0x1]
    %v184 = vperm.slane %v182, 0
    %v187 = vsel %vm135, %v177, 0
    %189 = vmatpush.msra.mxu0 0.0
    %190 = vmatpush.msra.mxu0 0.0
    %191 = vmatpush.msra.mxu0 0.0
    %192 = vmatpush.msra.mxu0 0.0
    %193 = vmatpush.msra.mxu0 0.0
    %194 = vmatpush.msra.mxu0 0.0
    %195 = vmatpush.msra.mxu0 0.0
    %196 = vmatpush.msra.mxu0 0.0
    %197 = vmatpush.msra.mxu0 0.0
    %198 = vmatpush.msra.mxu0 0.0
    %199 = vmatpush.msra.mxu0 0.0
    %200 = vmatpush.msra.mxu0 0.0
    %201 = vmatpush.msra.mxu0 %v181
    %202 = vmatpush.msra.mxu0 %v180
    %203 = vmatpush.msra.mxu0 %v179
    %204 = vmatpush.msra.mxu0 %v178
    %205 = vmatmul.f32.gmra.mxu0 %v187
    %v206 = vpop.f32.mrf.mxu0
    %v207 = vadd.f32 %v184, %v206
    %208 = vdwg.mxu0
    %v209 = vxor.u32 %v207, 2147483648
    %v210 = vmul.f32 %v209, 1.442695
    %v211 = vpow.pop %v210
    %v212 = vadd.f32 %v211, 1.0
    %v213 = vrcp.pop %v212
    %v214 = vmul.f32 %v212, %v213
    %v215 = vsub.f32 1.0, %v214
    %v216 = vmul.f32 %v213, %v215
    %v217 = vadd.f32 %v213, %v216
    %vm218 = vweird.f32 %v212
    %vm219 = vweird.f32 %v213
    %vm220 = vmor %vm218, %vm219
    %v221 = vsel %vm220, %v213, %v217
    %v222 = vand.u32 2147483647, %v212
    %vm223 = vcmp.eq.f32.partialorder %v222, 8.507059e+37
    %v224 = vand.u32 %v212, 2147483648
    %v225 = vor.u32 1.1754944e-38, %v224
    %v226 = vsel %vm223, %v225, %v221
    %v227 = vmul.f32 1.0, %v226
    %v228 = vld [vmem:[%s7] sm:$0xff]
    %v229 = vld [vmem:[%s7 + $0x8] sm:$0xff]
    %v230 = vld [vmem:[%s7 + $0x10] sm:$0xff]
    %v231 = vld [vmem:[%s7 + $0x18] sm:$0xff]
    %v232 = vld [vmem:[%s8] sm:$0x1]
    %v234 = vperm.slane %v232, 0
    %v237 = vsel %vm135, %v227, 0
    %239 = vmatpush.msra.mxu0 0.0
    %240 = vmatpush.msra.mxu0 0.0
    %241 = vmatpush.msra.mxu0 0.0
    %242 = vmatpush.msra.mxu0 0.0
    %243 = vmatpush.msra.mxu0 0.0
    %244 = vmatpush.msra.mxu0 0.0
    %245 = vmatpush.msra.mxu0 0.0
    %246 = vmatpush.msra.mxu0 0.0
    %247 = vmatpush.msra.mxu0 0.0
    %248 = vmatpush.msra.mxu0 0.0
    %249 = vmatpush.msra.mxu0 0.0
    %250 = vmatpush.msra.mxu0 0.0
    %251 = vmatpush.msra.mxu0 %v231
    %252 = vmatpush.msra.mxu0 %v230
    %253 = vmatpush.msra.mxu0 %v229
    %254 = vmatpush.msra.mxu0 %v228
    %255 = vmatmul.f32.gmra.mxu0 %v237
    %v256 = vpop.f32.mrf.mxu0
    %v257 = vadd.f32 %v234, %v256
    %258 = vdwg.mxu0
    %vm259 = vcmask 31744
    %260 = vst.msk [vmem:[%s9] sm:$0xff] %vm259, %v257
    // Predicated region
    $region50: #{tpu_custom_call.1} parent=1 // pred_check
      _
    $region51: #{tpu_custom_call.1} parent=1 // pred_check_branch
      %262 = sbr.rel (0) target = $region53
    $region52: #{tpu_custom_call.1} parent=1 // pred_region
      _
    $region53: #{tpu_custom_call.1} parent=1 // pred_fallthru
      _
    // Predicated region
    $region54: #{tpu_custom_call.1} parent=1 // pred_check
      _
    $region55: #{tpu_custom_call.1} parent=1 // pred_check_branch
      %264 = sbr.rel (0) target = $region57
    $region56: #{tpu_custom_call.1} parent=1 // pred_region
      _
    $region57: #{tpu_custom_call.1} parent=1 // pred_fallthru
      _
    %265 = vsyncpa [#allocation3], 1
    %266 = vsyncpa [#allocation5], 1

// kernel: tpu_custom_call.1
$region0: #{tpu_custom_call.1}
  #allocation0 [shape = 'u32[]', space=smem, size = 0x4, offset = 0x4, fixed_abs, tag = 'smem constant byte address 0x4 - core index']
  #allocation1 [shape = 'u32[72,128]{1,0:T(1,128)}', space=vmem, size = 0x9000, scoped, tag = 'internal scratch']
  %s0 = inlined_call_operand.hbm [shape: f32[8,16], index: 0, kind: input, shape index: {}]
  %s1 = inlined_call_operand.hbm [shape: f32[16,32], index: 1, kind: input, shape index: {}]
  %s2 = inlined_call_operand.vmem [shape: f32[1,32], index: 2, kind: input, shape index: {}]
  %s3 = inlined_call_operand.vmem [shape: f32[32,32], index: 3, kind: input, shape index: {}]
  %s4 = inlined_call_operand.vmem [shape: f32[1,32], index: 4, kind: input, shape index: {}]
  %s5 = inlined_call_operand.hbm [shape: f32[32,32], index: 5, kind: input, shape index: {}]
  %s6 = inlined_call_operand.vmem [shape: f32[1,32], index: 6, kind: input, shape index: {}]
  %s7 = inlined_call_operand.vmem [shape: f32[32,4], index: 7, kind: input, shape index: {}]
  %s8 = inlined_call_operand.vmem [shape: f32[1,4], index: 8, kind: input, shape index: {}]
  %s9 = inlined_call_operand.vmem [shape: f32[8,4], index: 9, kind: output, shape index: {}]
  %s10 = sld [smem:[#allocation0]]
  $region58: #{tpu_custom_call.1} parent=0
    _
  %s12 = ssub.s32 1, %s10
  %s13 = scalar_select 0, %s12, %s10
  $region1: #{tpu_custom_call.1} parent=0
    #allocation2 [shape = 'u8[4096]{0}', space=vmem, size = 0x1000, scoped, tag = 'input window, operand 0, single buffered']
    #allocation3 [shape = 's32[1]{0}', space=sflag, size = 0x4, scoped, tag = 'scoped memory for tpu_custom_call.1']
    #allocation4 [shape = 'u8[8192]{0}', space=vmem, size = 0x2000, scoped, tag = 'input window, operand 1, single buffered']
    #allocation5 [shape = 's32[1]{0}', space=sflag, size = 0x4, scoped, tag = 'scoped memory for tpu_custom_call.1']
    #allocation6 [shape = 'u8[16384]{0}', space=vmem, size = 0x4000, scoped, tag = 'input window, operand 5, single buffered']
    %14 = vsyncpa [#allocation3], 0
    %15 = vsyncpa [#allocation5], 0
    // Predicated region
    $region2: #{tpu_custom_call.1} parent=1 // pred_check
      _
    $region3: #{tpu_custom_call.1} parent=1 // pred_check_branch
      %17 = sbr.rel (0) target = $region5
    $region4: #{tpu_custom_call.1} parent=1 // pred_region
      %19 = vsyncadd [#allocation3], 0
      %s21 = sshll.u32 %s0, 4
      %s22 = int_to_ptr.hbm [resolvable:$true] %s21
      %s23 = sshll.u32 [#allocation2], 4
      %s24 = int_to_ptr.vmem [resolvable:$true] %s23
      %26 = dma.hbm_to_vmem [thread:$0]  %s22, 128, %s24, [#allocation3]
    $region5: #{tpu_custom_call.1} parent=1 // pred_fallthru
      _
    // Predicated region
    $region6: #{tpu_custom_call.1} parent=1 // pred_check
      _
    $region7: #{tpu_custom_call.1} parent=1 // pred_check_branch
      %28 = sbr.rel (0) target = $region9
    $region8: #{tpu_custom_call.1} parent=1 // pred_region
      %30 = vsyncadd [#allocation5], 0
      %s31 = sshll.u32 %s1, 4
      %s32 = int_to_ptr.hbm [resolvable:$true] %s31
      %s33 = sshll.u32 [#allocation4], 4
      %s34 = int_to_ptr.vmem [resolvable:$true] %s33
      %39 = dma.hbm_to_vmem [thread:$0]  %s32, 256, %s34, [#allocation5], 128, 128, 8
    $region9: #{tpu_custom_call.1} parent=1 // pred_fallthru
      _
    // Predicated region
    $region10: #{tpu_custom_call.1} parent=1 // pred_check
      _
    $region11: #{tpu_custom_call.1} parent=1 // pred_check_branch
      %41 = sbr.rel (0) target = $region13
    $region12: #{tpu_custom_call.1} parent=1 // pred_region
      _
    $region13: #{tpu_custom_call.1} parent=1 // pred_fallthru
      _
    // Predicated region
    $region14: #{tpu_custom_call.1} parent=1 // pred_check
      _
    $region15: #{tpu_custom_call.1} parent=1 // pred_check_branch
      %43 = sbr.rel (0) target = $region17
    $region16: #{tpu_custom_call.1} parent=1 // pred_region
      _
    $region17: #{tpu_custom_call.1} parent=1 // pred_fallthru
      _
    // Predicated region
    $region18: #{tpu_custom_call.1} parent=1 // pred_check
      _
    $region19: #{tpu_custom_call.1} parent=1 // pred_check_branch
      %45 = sbr.rel (0) target = $region21
    $region20: #{tpu_custom_call.1} parent=1 // pred_region
      _
    $region21: #{tpu_custom_call.1} parent=1 // pred_fallthru
      _
    // Predicated region
    $region22: #{tpu_custom_call.1} parent=1 // pred_check
      _
    $region23: #{tpu_custom_call.1} parent=1 // pred_check_branch
      %47 = sbr.rel (0) target = $region25
    $region24: #{tpu_custom_call.1} parent=1 // pred_region
      %49 = vsyncadd [#allocation5], 0
      %s50 = sshll.u32 %s5, 4
      %s51 = int_to_ptr.hbm [resolvable:$true] %s50
      %s52 = sshll.u32 [#allocation6], 4
      %s53 = int_to_ptr.vmem [resolvable:$true] %s52
      %58 = dma.hbm_to_vmem [thread:$0]  %s51, 512, %s53, [#allocation5], 128, 128, 8
    $region25: #{tpu_custom_call.1} parent=1 // pred_fallthru
      _
    // Predicated region
    $region26: #{tpu_custom_call.1} parent=1 // pred_check
      _
    $region27: #{tpu_custom_call.1} parent=1 // pred_check_branch
      %60 = sbr.rel (0) target = $region29
    $region28: #{tpu_custom_call.1} parent=1 // pred_region
      _
    $region29: #{tpu_custom_call.1} parent=1 // pred_fallthru
      _
    // Predicated region
    $region30: #{tpu_custom_call.1} parent=1 // pred_check
      _
    $region31: #{tpu_custom_call.1} parent=1 // pred_check_branch
      %62 = sbr.rel (0) target = $region33
    $region32: #{tpu_custom_call.1} parent=1 // pred_region
      _
    $region33: #{tpu_custom_call.1} parent=1 // pred_fallthru
      _
    // Predicated region
    $region34: #{tpu_custom_call.1} parent=1 // pred_check
      _
    $region35: #{tpu_custom_call.1} parent=1 // pred_check_branch
      %64 = sbr.rel (0) target = $region37
    $region36: #{tpu_custom_call.1} parent=1 // pred_region
      _
    $region37: #{tpu_custom_call.1} parent=1 // pred_fallthru
      _
    // Predicated region
    $region38: #{tpu_custom_call.1} parent=1 // pred_check
      _
    $region39: #{tpu_custom_call.1} parent=1 // pred_check_branch
      %66 = sbr.rel (0) target = $region41
    $region40: #{tpu_custom_call.1} parent=1 // pred_region
      %68 = dma.done [#allocation3], 128
    $region41: #{tpu_custom_call.1} parent=1 // pred_fallthru
      _
    // Predicated region
    $region42: #{tpu_custom_call.1} parent=1 // pred_check
      _
    $region43: #{tpu_custom_call.1} parent=1 // pred_check_branch
      %70 = sbr.rel (0) target = $region45
    $region44: #{tpu_custom_call.1} parent=1 // pred_region
      %72 = dma.done [#allocation5], 256
    $region45: #{tpu_custom_call.1} parent=1 // pred_fallthru
      _
    // Predicated region
    $region46: #{tpu_custom_call.1} parent=1 // pred_check
      _
    $region47: #{tpu_custom_call.1} parent=1 // pred_check_branch
      %74 = sbr.rel (0) target = $region49
    $region48: #{tpu_custom_call.1} parent=1 // pred_region
      %76 = dma.done [#allocation5], 512
    $region49: #{tpu_custom_call.1} parent=1 // pred_fallthru
      _
    %v77 = vld [vmem:[#allocation2] sm:$0xff]
    %v78 = vld [vmem:[#allocation4] sm:$0xff]
    %v79 = vld [vmem:[#allocation4 + $0x8] sm:$0xff]
    %v80 = vld [vmem:[%s2] sm:$0x1]
    %v82 = vperm.slane %v80, 0
    %vm84 = vcmask 130048
    %v86 = vsel %vm84, %v77, 0
    %88 = vmatpush.msra.mxu0 0.0
    %89 = vmatpush.msra.mxu0 0.0
    %90 = vmatpush.msra.mxu0 0.0
    %91 = vmatpush.msra.mxu0 0.0
    %92 = vmatpush.msra.mxu0 0.0
    %93 = vmatpush.msra.mxu0 0.0
    %94 = vmatpush.msra.mxu0 0.0
    %95 = vmatpush.msra.mxu0 0.0
    %96 = vmatpush.msra.mxu0 0.0
    %97 = vmatpush.msra.mxu0 0.0
    %98 = vmatpush.msra.mxu0 0.0
    %99 = vmatpush.msra.mxu0 0.0
    %100 = vmatpush.msra.mxu0 0.0
    %101 = vmatpush.msra.mxu0 0.0
    %102 = vmatpush.msra.mxu0 %v79
    %103 = vmatpush.msra.mxu0 %v78
    %104 = vmatmul.f32.gmra.mxu0 %v86
    %v105 = vpop.f32.mrf.mxu0
    %v106 = vadd.f32 %v82, %v105
    %107 = vdwg.mxu0
    %v108 = vxor.u32 %v106, 2147483648
    %v109 = vmul.f32 %v108, 1.442695
    %v110 = vpow.pop %v109
    %v111 = vadd.f32 %v110, 1.0
    %v112 = vrcp.pop %v111
    %v113 = vmul.f32 %v111, %v112
    %v114 = vsub.f32 1.0, %v113
    %v115 = vmul.f32 %v112, %v114
    %v116 = vadd.f32 %v112, %v115
    %vm117 = vweird.f32 %v111
    %vm118 = vweird.f32 %v112
    %vm119 = vmor %vm117, %vm118
    %v120 = vsel %vm119, %v112, %v116
    %v121 = vand.u32 2147483647, %v111
    %vm122 = vcmp.eq.f32.partialorder %v121, 8.507059e+37
    %v123 = vand.u32 %v111, 2147483648
    %v124 = vor.u32 1.1754944e-38, %v123
    %v125 = vsel %vm122, %v124, %v120
    %v126 = vmul.f32 1.0, %v125
    %v127 = vld [vmem:[%s3] sm:$0xff]
    %v128 = vld [vmem:[%s3 + $0x8] sm:$0xff]
    %v129 = vld [vmem:[%s3 + $0x10] sm:$0xff]
    %v130 = vld [vmem:[%s3 + $0x18] sm:$0xff]
    %v131 = vld [vmem:[%s4] sm:$0x1]
    %v133 = vperm.slane %v131, 0
    %vm135 = vcmask 261120
    %v137 = vsel %vm135, %v126, 0
    %139 = vmatpush.msra.mxu0 0.0
    %140 = vmatpush.msra.mxu0 0.0
    %141 = vmatpush.msra.mxu0 0.0
    %142 = vmatpush.msra.mxu0 0.0
    %143 = vmatpush.msra.mxu0 0.0
    %144 = vmatpush.msra.mxu0 0.0
    %145 = vmatpush.msra.mxu0 0.0
    %146 = vmatpush.msra.mxu0 0.0
    %147 = vmatpush.msra.mxu0 0.0
    %148 = vmatpush.msra.mxu0 0.0
    %149 = vmatpush.msra.mxu0 0.0
    %150 = vmatpush.msra.mxu0 0.0
    %151 = vmatpush.msra.mxu0 %v130
    %152 = vmatpush.msra.mxu0 %v129
    %153 = vmatpush.msra.mxu0 %v128
    %154 = vmatpush.msra.mxu0 %v127
    %155 = vmatmul.f32.gmra.mxu0 %v137
    %v156 = vpop.f32.mrf.mxu0
    %v157 = vadd.f32 %v133, %v156
    %158 = vdwg.mxu0
    %v159 = vxor.u32 %v157, 2147483648
    %v160 = vmul.f32 %v159, 1.442695
    %v161 = vpow.pop %v160
    %v162 = vadd.f32 %v161, 1.0
    %v163 = vrcp.pop %v162
    %v164 = vmul.f32 %v162, %v163
    %v165 = vsub.f32 1.0, %v164
    %v166 = vmul.f32 %v163, %v165
    %v167 = vadd.f32 %v163, %v166
    %vm168 = vweird.f32 %v162
    %vm169 = vweird.f32 %v163
    %vm170 = vmor %vm168, %vm169
    %v171 = vsel %vm170, %v163, %v167
    %v172 = vand.u32 2147483647, %v162
    %vm173 = vcmp.eq.f32.partialorder %v172, 8.507059e+37
    %v174 = vand.u32 %v162, 2147483648
    %v175 = vor.u32 1.1754944e-38, %v174
    %v176 = vsel %vm173, %v175, %v171
    %v177 = vmul.f32 1.0, %v176
    %v178 = vld [vmem:[#allocation6] sm:$0xff]
    %v179 = vld [vmem:[#allocation6 + $0x8] sm:$0xff]
    %v180 = vld [vmem:[#allocation6 + $0x10] sm:$0xff]
    %v181 = vld [vmem:[#allocation6 + $0x18] sm:$0xff]
    %v182 = vld [vmem:[%s6] sm:$0x1]
    %v184 = vperm.slane %v182, 0
    %v187 = vsel %vm135, %v177, 0
    %189 = vmatpush.msra.mxu0 0.0
    %190 = vmatpush.msra.mxu0 0.0
    %191 = vmatpush.msra.mxu0 0.0
    %192 = vmatpush.msra.mxu0 0.0
    %193 = vmatpush.msra.mxu0 0.0
    %194 = vmatpush.msra.mxu0 0.0
    %195 = vmatpush.msra.mxu0 0.0
    %196 = vmatpush.msra.mxu0 0.0
    %197 = vmatpush.msra.mxu0 0.0
    %198 = vmatpush.msra.mxu0 0.0
    %199 = vmatpush.msra.mxu0 0.0
    %200 = vmatpush.msra.mxu0 0.0
    %201 = vmatpush.msra.mxu0 %v181
    %202 = vmatpush.msra.mxu0 %v180
    %203 = vmatpush.msra.mxu0 %v179
    %204 = vmatpush.msra.mxu0 %v178
    %205 = vmatmul.f32.gmra.mxu0 %v187
    %v206 = vpop.f32.mrf.mxu0
    %v207 = vadd.f32 %v184, %v206
    %208 = vdwg.mxu0
    %v209 = vxor.u32 %v207, 2147483648
    %v210 = vmul.f32 %v209, 1.442695
    %v211 = vpow.pop %v210
    %v212 = vadd.f32 %v211, 1.0
    %v213 = vrcp.pop %v212
    %v214 = vmul.f32 %v212, %v213
    %v215 = vsub.f32 1.0, %v214
    %v216 = vmul.f32 %v213, %v215
    %v217 = vadd.f32 %v213, %v216
    %vm218 = vweird.f32 %v212
    %vm219 = vweird.f32 %v213
    %vm220 = vmor %vm218, %vm219
    %v221 = vsel %vm220, %v213, %v217
    %v222 = vand.u32 2147483647, %v212
    %vm223 = vcmp.eq.f32.partialorder %v222, 8.507059e+37
    %v224 = vand.u32 %v212, 2147483648
    %v225 = vor.u32 1.1754944e-38, %v224
    %v226 = vsel %vm223, %v225, %v221
    %v227 = vmul.f32 1.0, %v226
    %v228 = vld [vmem:[%s7] sm:$0xff]
    %v229 = vld [vmem:[%s7 + $0x8] sm:$0xff]
    %v230 = vld [vmem:[%s7 + $0x10] sm:$0xff]
    %v231 = vld [vmem:[%s7 + $0x18] sm:$0xff]
    %v232 = vld [vmem:[%s8] sm:$0x1]
    %v234 = vperm.slane %v232, 0
    %v237 = vsel %vm135, %v227, 0
    %239 = vmatpush.msra.mxu0 0.0
    %240 = vmatpush.msra.mxu0 0.0
    %241 = vmatpush.msra.mxu0 0.0
    %242 = vmatpush.msra.mxu0 0.0
    %243 = vmatpush.msra.mxu0 0.0
    %244 = vmatpush.msra.mxu0 0.0
    %245 = vmatpush.msra.mxu0 0.0
    %246 = vmatpush.msra.mxu0 0.0
    %247 = vmatpush.msra.mxu0 0.0
    %248 = vmatpush.msra.mxu0 0.0
    %249 = vmatpush.msra.mxu0 0.0
    %250 = vmatpush.msra.mxu0 0.0
    %251 = vmatpush.msra.mxu0 %v231
    %252 = vmatpush.msra.mxu0 %v230
    %253 = vmatpush.msra.mxu0 %v229
    %254 = vmatpush.msra.mxu0 %v228
    %255 = vmatmul.f32.gmra.mxu0 %v237
    %v256 = vpop.f32.mrf.mxu0
    %v257 = vadd.f32 %v234, %v256
    %258 = vdwg.mxu0
    %vm259 = vcmask 31744
    %260 = vst.msk [vmem:[%s9] sm:$0xff] %vm259, %v257
    // Predicated region
    $region50: #{tpu_custom_call.1} parent=1 // pred_check
      _
    $region51: #{tpu_custom_call.1} parent=1 // pred_check_branch
      %262 = sbr.rel (0) target = $region53
    $region52: #{tpu_custom_call.1} parent=1 // pred_region
      _
    $region53: #{tpu_custom_call.1} parent=1 // pred_fallthru
      _
    // Predicated region
    $region54: #{tpu_custom_call.1} parent=1 // pred_check
      _
    $region55: #{tpu_custom_call.1} parent=1 // pred_check_branch
      %264 = sbr.rel (0) target = $region57
    $region56: #{tpu_custom_call.1} parent=1 // pred_region
      _
    $region57: #{tpu_custom_call.1} parent=1 // pred_fallthru
      _
    %265 = vsyncpa [#allocation3], 1
    %266 = vsyncpa [#allocation5], 1

</llo_original>
